<compile_context>
chip_gen: v7x
topology: tpu7x:2x2x1
jax: 0.10.0
libtpu: 0.0.40
codegen_flags: <defaults>
</compile_context>

<pallas_src>
import numpy as np
import jax
import jax.numpy as jnp
from jax import lax
from jax.experimental import pallas as pl
from jax.experimental.pallas import tpu as pltpu

# ---- small, deterministic hyperparameters consistent with the module ----
LATENT_DIM = 8
OUT_DIM = LATENT_DIM          # latent_private is None -> out_dim == latent_dim
HIDDEN = 32                   # hidden_size (small stand-in for 512)
SEQ_LEN = 8                   # token sequence length
DATA_DIM = (SEQ_LEN, 4, 16)   # data_dim; input_size (vocab) = data_dim[-1]*data_dim[-2]
VOCAB = DATA_DIM[-1] * DATA_DIM[-2]
ETA = 1e-6                    # Constants.eta

# lane-aligned width of one direction's gate bank (3*H rounded up to a 128-lane boundary)
BANK = ((3 * HIDDEN + 127) // 128) * 128
HP = jax.lax.Precision.HIGHEST


def enc_txtrnn_kernel(tok_ref, giproj_ref, whh_ref, bias_ref, w_head_ref, out_ref):
    H = HIDDEN
    G = 3 * H

    # ---- one-time loads; everything stays vreg-resident across the recurrence ----
    whh = whh_ref[...]                                   # (H, 3H) bf16
    bhh = bias_ref[:, 0:G]                               # (1, 3H) f32  fwd hidden biases
    bhh_bn = bias_ref[:, G:G + H]                        # (1, H)  f32  bwd n-gate hidden bias
    b_head = bias_ref[:, G + H:G + H + 2 * OUT_DIM]      # (1, 2*out)

    h = jnp.zeros((1, H), jnp.float32)
    gi = None
    # ---- statically unrolled forward recurrence: one bf16 (1,H)@(H,3H) MXU op / step ----
    for t in range(SEQ_LEN):
        tok = tok_ref[t]                                 # scalar token id from SMEM
        gi = giproj_ref[pl.ds(tok, 1), :]                # (1, 2*BANK) f32; fwd @ lane 0, bwd @ 128
        gh = jnp.dot(h.astype(jnp.bfloat16), whh,
                     preferred_element_type=jnp.float32) + bhh         # (1, 3H) f32
        srz = jax.nn.sigmoid(gi[:, :2 * H] + gh[:, :2 * H])            # fused 2H-wide sigmoid
        r = srz[:, :H]
        z = srz[:, H:]
        n = jnp.tanh(gi[:, 2 * H:G] + r * gh[:, 2 * H:])
        h = (1.0 - z) * n + z * h

    # ---- backward direction: output[-1][:, H:] equals one bwd GRU step over x[L-1]
    #      starting from h=0, so gh_b == b_hh_b and no matmul is needed here (r/z parts of
    #      b_hh_b are pre-folded into the bwd bank of giproj). ----
    gi_last = gi                                         # row for token L-1 (already loaded)
    srz_b = jax.nn.sigmoid(gi_last[:, BANK:BANK + 2 * H])
    r_b = srz_b[:, :H]
    z_b = srz_b[:, H:]
    n_b = jnp.tanh(gi_last[:, BANK + 2 * H:BANK + G] + r_b * bhh_bn)
    h_sum = h + (1.0 - z_b) * n_b                        # h_fwd + (1-z_b)*n_b + z_b*0

    # ---- fused o2p head: single bf16 (1,H)@(H,2*out_dim) matmul, f32 accumulation ----
    ps = jnp.dot(h_sum.astype(jnp.bfloat16), w_head_ref[...],
                 preferred_element_type=jnp.float32) + b_head          # (1, 2*OUT_DIM)
    mu = ps[:, :OUT_DIM]
    lv_raw = ps[:, OUT_DIM:]

    # softmax over last dim + eta (divide routed to EUP approx reciprocal), single store
    m = jnp.max(lv_raw, axis=-1, keepdims=True)
    e = jnp.exp(lv_raw - m)
    s = jnp.sum(e, axis=-1, keepdims=True)
    lv = e * pl.reciprocal(s, approx=True) + ETA
    out_ref[...] = jnp.concatenate([mu, lv], axis=-1)


@jax.jit
def enc_txtrnn(tokens, p):
    H = HIDDEN

    # ---- hoisted input projection: per-token gi tables for both directions, computed once
    #      per parameter set at full f32 precision in XLA (outside the latency-bound kernel).
    wih_f = jnp.concatenate([p['wih_f'][0], p['wih_f'][1], p['wih_f'][2]], axis=1)   # (H, 3H)
    bih_f = jnp.concatenate([p['bih_f'][0], p['bih_f'][1], p['bih_f'][2]], axis=1)   # (1, 3H)
    wih_b = jnp.concatenate([p['wih_b'][0], p['wih_b'][1], p['wih_b'][2]], axis=1)   # (H, 3H)
    bib_b = jnp.concatenate([p['bih_b'][0] + p['bhh_b'][0],
                             p['bih_b'][1] + p['bhh_b'][1],
                             p['bih_b'][2]], axis=1)                                 # (1, 3H)
    gi_f = jnp.dot(p['emb'], wih_f, precision=HP) + bih_f                            # (V, 3H)
    gi_b = jnp.dot(p['emb'], wih_b, precision=HP) + bib_b                            # (V, 3H)
    pad = jnp.zeros((VOCAB, BANK - 3 * H), jnp.float32)
    giproj = jnp.concatenate([gi_f, pad, gi_b, pad], axis=1)    # (V, 2*BANK) 128-lane banks

    # hidden-side fwd gate weights & head weights in bf16 (single-pass MXU; f32 accumulate)
    whh = jnp.concatenate([p['whh_f'][0], p['whh_f'][1], p['whh_f'][2]],
                          axis=1).astype(jnp.bfloat16)                               # (H, 3H)
    w_head = jnp.concatenate([p['w_mu'], p['w_lv']], axis=1).astype(jnp.bfloat16)    # (H, 2*out)

    # all tiny biases packed into a single (1, 3H + H + 2*out) DMA
    bias = jnp.concatenate([p['bhh_f'][0], p['bhh_f'][1], p['bhh_f'][2],
                            p['bhh_b'][2], p['b_mu'], p['b_lv']], axis=1)

    vmem = pl.BlockSpec(memory_space=pltpu.MemorySpace.VMEM)
    smem = pl.BlockSpec(memory_space=pltpu.MemorySpace.SMEM)
    ps = pl.pallas_call(
        enc_txtrnn_kernel,
        out_shape=jax.ShapeDtypeStruct((1, 2 * OUT_DIM), jnp.float32),
        in_specs=[smem, vmem, vmem, vmem, vmem],
        out_specs=vmem,
    )(tokens, giproj, whh, bias, w_head)

    return ps[:, :OUT_DIM], ps[:, OUT_DIM:]


def init_params(key):
    ks = jax.random.split(key, 13)
    s = 1.0 / np.sqrt(HIDDEN)

    def u(k, shape):
        return jax.random.uniform(k, shape, jnp.float32, -s, s)

    return dict(
        emb=jax.random.normal(ks[0], (VOCAB, HIDDEN), jnp.float32),
        wih_f=u(ks[1], (3, HIDDEN, HIDDEN)), whh_f=u(ks[2], (3, HIDDEN, HIDDEN)),
        bih_f=u(ks[3], (3, 1, HIDDEN)),      bhh_f=u(ks[4], (3, 1, HIDDEN)),
        wih_b=u(ks[5], (3, HIDDEN, HIDDEN)), whh_b=u(ks[6], (3, HIDDEN, HIDDEN)),
        bih_b=u(ks[7], (3, 1, HIDDEN)),      bhh_b=u(ks[8], (3, 1, HIDDEN)),
        w_mu=u(ks[9], (HIDDEN, OUT_DIM)),    b_mu=u(ks[10], (1, OUT_DIM)),
        w_lv=u(ks[11], (HIDDEN, OUT_DIM)),   b_lv=u(ks[12], (1, OUT_DIM)),
    )


def ref_forward(tokens, p):
    """Pure-JAX f32 reference of the same forward pass (for correctness check)."""
    x_emb = p['emb'][tokens]  # (L, H)

    def cell(x, h, wih, whh, bih, bhh):
        gi = [jnp.dot(x, wih[g], precision=HP) + bih[g] for g in range(3)]
        gh = [jnp.dot(h, whh[g], precision=HP) + bhh[g] for g in range(3)]
        r = jax.nn.sigmoid(gi[0] + gh[0])
        z = jax.nn.sigmoid(gi[1] + gh[1])
        n = jnp.tanh(gi[2] + r * gh[2])
        return (1.0 - z) * n + z * h

    h = jnp.zeros((1, HIDDEN), jnp.float32)
    for t in range(SEQ_LEN):
        h = cell(x_emb[t:t + 1], h, p['wih_f'], p['whh_f'], p['bih_f'], p['bhh_f'])
    hb = cell(x_emb[SEQ_LEN - 1:SEQ_LEN], jnp.zeros((1, HIDDEN), jnp.float32),
              p['wih_b'], p['whh_b'], p['bih_b'], p['bhh_b'])
    hs = h + hb
    mu = jnp.dot(hs, p['w_mu'], precision=HP) + p['b_mu']
    lv = jax.nn.softmax(jnp.dot(hs, p['w_lv'], precision=HP) + p['b_lv'], axis=-1) + ETA
    return mu, lv


if __name__ == "__main__":
    key = jax.random.PRNGKey(0)
    k_tok, k_par = jax.random.split(key)

    # batch['data']: a sequence of token ids in [0, input_size)
    tokens = jax.random.randint(k_tok, (SEQ_LEN,), 0, VOCAB, dtype=jnp.int32)
    params = init_params(k_par)

    mu, logvar = enc_txtrnn(tokens, params)
    jax.block_until_ready((mu, logvar))

    mu_ref, lv_ref = ref_forward(tokens, params)
    # Tolerances account for the deliberate bf16 MXU operands (f32 accumulation) and the
    # EUP approx-reciprocal in the softmax.
    np.testing.assert_allclose(np.asarray(mu), np.asarray(mu_ref), rtol=2e-2, atol=5e-3)
    np.testing.assert_allclose(np.asarray(logvar), np.asarray(lv_ref), rtol=2e-2, atol=5e-3)

    print("KERNEL_OK")
</pallas_src>

<mosaic_0001>
module attributes {stable_mosaic.version = 11 : i64} {
  func.func @enc_txtrnn_kernel(%arg0: memref<8xi32, #tpu.memory_space<smem>>, %arg1: memref<64x256xf32, #tpu.memory_space<vmem>>, %arg2: memref<32x96xbf16, #tpu.memory_space<vmem>>, %arg3: memref<1x144xf32, #tpu.memory_space<vmem>>, %arg4: memref<32x16xbf16, #tpu.memory_space<vmem>>, %arg5: memref<1x16xf32, #tpu.memory_space<vmem>>) attributes {dimension_semantics = [], scalar_prefetch = 0 : i64, scratch_operands = 0 : i64, tpu.core_type = #tpu.core_type<tc>} {
    %c0 = arith.constant 0 : index
    %c0_0 = arith.constant 0 : index
    %0 = vector.load %arg2[%c0, %c0_0] : memref<32x96xbf16, #tpu.memory_space<vmem>>, vector<32x96xbf16>
    %c0_1 = arith.constant 0 : index
    %c0_2 = arith.constant 0 : index
    %1 = vector.load %arg3[%c0_1, %c0_2] : memref<1x144xf32, #tpu.memory_space<vmem>>, vector<1x96xf32>
    %c0_3 = arith.constant 0 : index
    %c96 = arith.constant 96 : index
    %2 = vector.load %arg3[%c0_3, %c96] : memref<1x144xf32, #tpu.memory_space<vmem>>, vector<1x32xf32>
    %c0_4 = arith.constant 0 : index
    %c128 = arith.constant 128 : index
    %3 = vector.load %arg3[%c0_4, %c128] : memref<1x144xf32, #tpu.memory_space<vmem>>, vector<1x16xf32>
    %cst = arith.constant 0.000000e+00 : f32
    %4 = vector.broadcast %cst : f32 to vector<1x32xf32>
    %c0_5 = arith.constant 0 : index
    %5 = memref.load %arg0[%c0_5] : memref<8xi32, #tpu.memory_space<smem>>
    %6 = arith.index_cast %5 : i32 to index
    %c0_6 = arith.constant 0 : index
    %7 = vector.load %arg1[%6, %c0_6] : memref<64x256xf32, #tpu.memory_space<vmem>>, vector<1x256xf32>
    %8 = arith.truncf %4 : vector<1x32xf32> to vector<1x32xbf16>
    %cst_7 = arith.constant dense<0.000000e+00> : vector<1x96xf32>
    %9 = tpu.matmul %8, %0, %cst_7 {dimension_numbers = #tpu.dot_dimension_numbers<[1], [0], [0], [1], [0, 0, 1, 1], [], []>} : vector<1x32xbf16>, vector<32x96xbf16>, vector<1x96xf32> -> vector<1x96xf32>
    %10 = arith.addf %9, %1 : vector<1x96xf32>
    %11 = vector.extract_strided_slice %7 {offsets = [0, 0], sizes = [1, 64], strides = [1, 1]} : vector<1x256xf32> to vector<1x64xf32>
    %12 = vector.extract_strided_slice %10 {offsets = [0, 0], sizes = [1, 64], strides = [1, 1]} : vector<1x96xf32> to vector<1x64xf32>
    %13 = arith.addf %11, %12 : vector<1x64xf32>
    %14 = arith.negf %13 : vector<1x64xf32>
    %15 = math.exp %14 : vector<1x64xf32>
    %cst_8 = arith.constant 1.000000e+00 : f32
    %16 = vector.broadcast %cst_8 : f32 to vector<1x64xf32>
    %17 = arith.addf %16, %15 : vector<1x64xf32>
    %18 = arith.divf %16, %17 : vector<1x64xf32>
    %19 = vector.extract_strided_slice %18 {offsets = [0, 0], sizes = [1, 32], strides = [1, 1]} : vector<1x64xf32> to vector<1x32xf32>
    %20 = vector.extract_strided_slice %18 {offsets = [0, 32], sizes = [1, 32], strides = [1, 1]} : vector<1x64xf32> to vector<1x32xf32>
    %21 = vector.extract_strided_slice %7 {offsets = [0, 64], sizes = [1, 32], strides = [1, 1]} : vector<1x256xf32> to vector<1x32xf32>
    %22 = vector.extract_strided_slice %10 {offsets = [0, 64], sizes = [1, 32], strides = [1, 1]} : vector<1x96xf32> to vector<1x32xf32>
    %23 = arith.mulf %19, %22 : vector<1x32xf32>
    %24 = arith.addf %21, %23 : vector<1x32xf32>
    %25 = math.tanh %24 : vector<1x32xf32>
    %cst_9 = arith.constant 1.000000e+00 : f32
    %26 = vector.broadcast %cst_9 : f32 to vector<1x32xf32>
    %27 = arith.subf %26, %20 : vector<1x32xf32>
    %28 = arith.mulf %27, %25 : vector<1x32xf32>
    %29 = arith.mulf %20, %4 : vector<1x32xf32>
    %30 = arith.addf %28, %29 : vector<1x32xf32>
    %c1 = arith.constant 1 : index
    %31 = memref.load %arg0[%c1] : memref<8xi32, #tpu.memory_space<smem>>
    %32 = arith.index_cast %31 : i32 to index
    %c0_10 = arith.constant 0 : index
    %33 = vector.load %arg1[%32, %c0_10] : memref<64x256xf32, #tpu.memory_space<vmem>>, vector<1x256xf32>
    %34 = arith.truncf %30 : vector<1x32xf32> to vector<1x32xbf16>
    %cst_11 = arith.constant dense<0.000000e+00> : vector<1x96xf32>
    %35 = tpu.matmul %34, %0, %cst_11 {dimension_numbers = #tpu.dot_dimension_numbers<[1], [0], [0], [1], [0, 0, 1, 1], [], []>} : vector<1x32xbf16>, vector<32x96xbf16>, vector<1x96xf32> -> vector<1x96xf32>
    %36 = arith.addf %35, %1 : vector<1x96xf32>
    %37 = vector.extract_strided_slice %33 {offsets = [0, 0], sizes = [1, 64], strides = [1, 1]} : vector<1x256xf32> to vector<1x64xf32>
    %38 = vector.extract_strided_slice %36 {offsets = [0, 0], sizes = [1, 64], strides = [1, 1]} : vector<1x96xf32> to vector<1x64xf32>
    %39 = arith.addf %37, %38 : vector<1x64xf32>
    %40 = arith.negf %39 : vector<1x64xf32>
    %41 = math.exp %40 : vector<1x64xf32>
    %cst_12 = arith.constant 1.000000e+00 : f32
    %42 = vector.broadcast %cst_12 : f32 to vector<1x64xf32>
    %43 = arith.addf %42, %41 : vector<1x64xf32>
    %44 = arith.divf %42, %43 : vector<1x64xf32>
    %45 = vector.extract_strided_slice %44 {offsets = [0, 0], sizes = [1, 32], strides = [1, 1]} : vector<1x64xf32> to vector<1x32xf32>
    %46 = vector.extract_strided_slice %44 {offsets = [0, 32], sizes = [1, 32], strides = [1, 1]} : vector<1x64xf32> to vector<1x32xf32>
    %47 = vector.extract_strided_slice %33 {offsets = [0, 64], sizes = [1, 32], strides = [1, 1]} : vector<1x256xf32> to vector<1x32xf32>
    %48 = vector.extract_strided_slice %36 {offsets = [0, 64], sizes = [1, 32], strides = [1, 1]} : vector<1x96xf32> to vector<1x32xf32>
    %49 = arith.mulf %45, %48 : vector<1x32xf32>
    %50 = arith.addf %47, %49 : vector<1x32xf32>
    %51 = math.tanh %50 : vector<1x32xf32>
    %cst_13 = arith.constant 1.000000e+00 : f32
    %52 = vector.broadcast %cst_13 : f32 to vector<1x32xf32>
    %53 = arith.subf %52, %46 : vector<1x32xf32>
    %54 = arith.mulf %53, %51 : vector<1x32xf32>
    %55 = arith.mulf %46, %30 : vector<1x32xf32>
    %56 = arith.addf %54, %55 : vector<1x32xf32>
    %c2 = arith.constant 2 : index
    %57 = memref.load %arg0[%c2] : memref<8xi32, #tpu.memory_space<smem>>
    %58 = arith.index_cast %57 : i32 to index
    %c0_14 = arith.constant 0 : index
    %59 = vector.load %arg1[%58, %c0_14] : memref<64x256xf32, #tpu.memory_space<vmem>>, vector<1x256xf32>
    %60 = arith.truncf %56 : vector<1x32xf32> to vector<1x32xbf16>
    %cst_15 = arith.constant dense<0.000000e+00> : vector<1x96xf32>
    %61 = tpu.matmul %60, %0, %cst_15 {dimension_numbers = #tpu.dot_dimension_numbers<[1], [0], [0], [1], [0, 0, 1, 1], [], []>} : vector<1x32xbf16>, vector<32x96xbf16>, vector<1x96xf32> -> vector<1x96xf32>
    %62 = arith.addf %61, %1 : vector<1x96xf32>
    %63 = vector.extract_strided_slice %59 {offsets = [0, 0], sizes = [1, 64], strides = [1, 1]} : vector<1x256xf32> to vector<1x64xf32>
    %64 = vector.extract_strided_slice %62 {offsets = [0, 0], sizes = [1, 64], strides = [1, 1]} : vector<1x96xf32> to vector<1x64xf32>
    %65 = arith.addf %63, %64 : vector<1x64xf32>
    %66 = arith.negf %65 : vector<1x64xf32>
    %67 = math.exp %66 : vector<1x64xf32>
    %cst_16 = arith.constant 1.000000e+00 : f32
    %68 = vector.broadcast %cst_16 : f32 to vector<1x64xf32>
    %69 = arith.addf %68, %67 : vector<1x64xf32>
    %70 = arith.divf %68, %69 : vector<1x64xf32>
    %71 = vector.extract_strided_slice %70 {offsets = [0, 0], sizes = [1, 32], strides = [1, 1]} : vector<1x64xf32> to vector<1x32xf32>
    %72 = vector.extract_strided_slice %70 {offsets = [0, 32], sizes = [1, 32], strides = [1, 1]} : vector<1x64xf32> to vector<1x32xf32>
    %73 = vector.extract_strided_slice %59 {offsets = [0, 64], sizes = [1, 32], strides = [1, 1]} : vector<1x256xf32> to vector<1x32xf32>
    %74 = vector.extract_strided_slice %62 {offsets = [0, 64], sizes = [1, 32], strides = [1, 1]} : vector<1x96xf32> to vector<1x32xf32>
    %75 = arith.mulf %71, %74 : vector<1x32xf32>
    %76 = arith.addf %73, %75 : vector<1x32xf32>
    %77 = math.tanh %76 : vector<1x32xf32>
    %cst_17 = arith.constant 1.000000e+00 : f32
    %78 = vector.broadcast %cst_17 : f32 to vector<1x32xf32>
    %79 = arith.subf %78, %72 : vector<1x32xf32>
    %80 = arith.mulf %79, %77 : vector<1x32xf32>
    %81 = arith.mulf %72, %56 : vector<1x32xf32>
    %82 = arith.addf %80, %81 : vector<1x32xf32>
    %c3 = arith.constant 3 : index
    %83 = memref.load %arg0[%c3] : memref<8xi32, #tpu.memory_space<smem>>
    %84 = arith.index_cast %83 : i32 to index
    %c0_18 = arith.constant 0 : index
    %85 = vector.load %arg1[%84, %c0_18] : memref<64x256xf32, #tpu.memory_space<vmem>>, vector<1x256xf32>
    %86 = arith.truncf %82 : vector<1x32xf32> to vector<1x32xbf16>
    %cst_19 = arith.constant dense<0.000000e+00> : vector<1x96xf32>
    %87 = tpu.matmul %86, %0, %cst_19 {dimension_numbers = #tpu.dot_dimension_numbers<[1], [0], [0], [1], [0, 0, 1, 1], [], []>} : vector<1x32xbf16>, vector<32x96xbf16>, vector<1x96xf32> -> vector<1x96xf32>
    %88 = arith.addf %87, %1 : vector<1x96xf32>
    %89 = vector.extract_strided_slice %85 {offsets = [0, 0], sizes = [1, 64], strides = [1, 1]} : vector<1x256xf32> to vector<1x64xf32>
    %90 = vector.extract_strided_slice %88 {offsets = [0, 0], sizes = [1, 64], strides = [1, 1]} : vector<1x96xf32> to vector<1x64xf32>
    %91 = arith.addf %89, %90 : vector<1x64xf32>
    %92 = arith.negf %91 : vector<1x64xf32>
    %93 = math.exp %92 : vector<1x64xf32>
    %cst_20 = arith.constant 1.000000e+00 : f32
    %94 = vector.broadcast %cst_20 : f32 to vector<1x64xf32>
    %95 = arith.addf %94, %93 : vector<1x64xf32>
    %96 = arith.divf %94, %95 : vector<1x64xf32>
    %97 = vector.extract_strided_slice %96 {offsets = [0, 0], sizes = [1, 32], strides = [1, 1]} : vector<1x64xf32> to vector<1x32xf32>
    %98 = vector.extract_strided_slice %96 {offsets = [0, 32], sizes = [1, 32], strides = [1, 1]} : vector<1x64xf32> to vector<1x32xf32>
    %99 = vector.extract_strided_slice %85 {offsets = [0, 64], sizes = [1, 32], strides = [1, 1]} : vector<1x256xf32> to vector<1x32xf32>
    %100 = vector.extract_strided_slice %88 {offsets = [0, 64], sizes = [1, 32], strides = [1, 1]} : vector<1x96xf32> to vector<1x32xf32>
    %101 = arith.mulf %97, %100 : vector<1x32xf32>
    %102 = arith.addf %99, %101 : vector<1x32xf32>
    %103 = math.tanh %102 : vector<1x32xf32>
    %cst_21 = arith.constant 1.000000e+00 : f32
    %104 = vector.broadcast %cst_21 : f32 to vector<1x32xf32>
    %105 = arith.subf %104, %98 : vector<1x32xf32>
    %106 = arith.mulf %105, %103 : vector<1x32xf32>
    %107 = arith.mulf %98, %82 : vector<1x32xf32>
    %108 = arith.addf %106, %107 : vector<1x32xf32>
    %c4 = arith.constant 4 : index
    %109 = memref.load %arg0[%c4] : memref<8xi32, #tpu.memory_space<smem>>
    %110 = arith.index_cast %109 : i32 to index
    %c0_22 = arith.constant 0 : index
    %111 = vector.load %arg1[%110, %c0_22] : memref<64x256xf32, #tpu.memory_space<vmem>>, vector<1x256xf32>
    %112 = arith.truncf %108 : vector<1x32xf32> to vector<1x32xbf16>
    %cst_23 = arith.constant dense<0.000000e+00> : vector<1x96xf32>
    %113 = tpu.matmul %112, %0, %cst_23 {dimension_numbers = #tpu.dot_dimension_numbers<[1], [0], [0], [1], [0, 0, 1, 1], [], []>} : vector<1x32xbf16>, vector<32x96xbf16>, vector<1x96xf32> -> vector<1x96xf32>
    %114 = arith.addf %113, %1 : vector<1x96xf32>
    %115 = vector.extract_strided_slice %111 {offsets = [0, 0], sizes = [1, 64], strides = [1, 1]} : vector<1x256xf32> to vector<1x64xf32>
    %116 = vector.extract_strided_slice %114 {offsets = [0, 0], sizes = [1, 64], strides = [1, 1]} : vector<1x96xf32> to vector<1x64xf32>
    %117 = arith.addf %115, %116 : vector<1x64xf32>
    %118 = arith.negf %117 : vector<1x64xf32>
    %119 = math.exp %118 : vector<1x64xf32>
    %cst_24 = arith.constant 1.000000e+00 : f32
    %120 = vector.broadcast %cst_24 : f32 to vector<1x64xf32>
    %121 = arith.addf %120, %119 : vector<1x64xf32>
    %122 = arith.divf %120, %121 : vector<1x64xf32>
    %123 = vector.extract_strided_slice %122 {offsets = [0, 0], sizes = [1, 32], strides = [1, 1]} : vector<1x64xf32> to vector<1x32xf32>
    %124 = vector.extract_strided_slice %122 {offsets = [0, 32], sizes = [1, 32], strides = [1, 1]} : vector<1x64xf32> to vector<1x32xf32>
    %125 = vector.extract_strided_slice %111 {offsets = [0, 64], sizes = [1, 32], strides = [1, 1]} : vector<1x256xf32> to vector<1x32xf32>
    %126 = vector.extract_strided_slice %114 {offsets = [0, 64], sizes = [1, 32], strides = [1, 1]} : vector<1x96xf32> to vector<1x32xf32>
    %127 = arith.mulf %123, %126 : vector<1x32xf32>
    %128 = arith.addf %125, %127 : vector<1x32xf32>
    %129 = math.tanh %128 : vector<1x32xf32>
    %cst_25 = arith.constant 1.000000e+00 : f32
    %130 = vector.broadcast %cst_25 : f32 to vector<1x32xf32>
    %131 = arith.subf %130, %124 : vector<1x32xf32>
    %132 = arith.mulf %131, %129 : vector<1x32xf32>
    %133 = arith.mulf %124, %108 : vector<1x32xf32>
    %134 = arith.addf %132, %133 : vector<1x32xf32>
    %c5 = arith.constant 5 : index
    %135 = memref.load %arg0[%c5] : memref<8xi32, #tpu.memory_space<smem>>
    %136 = arith.index_cast %135 : i32 to index
    %c0_26 = arith.constant 0 : index
    %137 = vector.load %arg1[%136, %c0_26] : memref<64x256xf32, #tpu.memory_space<vmem>>, vector<1x256xf32>
    %138 = arith.truncf %134 : vector<1x32xf32> to vector<1x32xbf16>
    %cst_27 = arith.constant dense<0.000000e+00> : vector<1x96xf32>
    %139 = tpu.matmul %138, %0, %cst_27 {dimension_numbers = #tpu.dot_dimension_numbers<[1], [0], [0], [1], [0, 0, 1, 1], [], []>} : vector<1x32xbf16>, vector<32x96xbf16>, vector<1x96xf32> -> vector<1x96xf32>
    %140 = arith.addf %139, %1 : vector<1x96xf32>
    %141 = vector.extract_strided_slice %137 {offsets = [0, 0], sizes = [1, 64], strides = [1, 1]} : vector<1x256xf32> to vector<1x64xf32>
    %142 = vector.extract_strided_slice %140 {offsets = [0, 0], sizes = [1, 64], strides = [1, 1]} : vector<1x96xf32> to vector<1x64xf32>
    %143 = arith.addf %141, %142 : vector<1x64xf32>
    %144 = arith.negf %143 : vector<1x64xf32>
    %145 = math.exp %144 : vector<1x64xf32>
    %cst_28 = arith.constant 1.000000e+00 : f32
    %146 = vector.broadcast %cst_28 : f32 to vector<1x64xf32>
    %147 = arith.addf %146, %145 : vector<1x64xf32>
    %148 = arith.divf %146, %147 : vector<1x64xf32>
    %149 = vector.extract_strided_slice %148 {offsets = [0, 0], sizes = [1, 32], strides = [1, 1]} : vector<1x64xf32> to vector<1x32xf32>
    %150 = vector.extract_strided_slice %148 {offsets = [0, 32], sizes = [1, 32], strides = [1, 1]} : vector<1x64xf32> to vector<1x32xf32>
    %151 = vector.extract_strided_slice %137 {offsets = [0, 64], sizes = [1, 32], strides = [1, 1]} : vector<1x256xf32> to vector<1x32xf32>
    %152 = vector.extract_strided_slice %140 {offsets = [0, 64], sizes = [1, 32], strides = [1, 1]} : vector<1x96xf32> to vector<1x32xf32>
    %153 = arith.mulf %149, %152 : vector<1x32xf32>
    %154 = arith.addf %151, %153 : vector<1x32xf32>
    %155 = math.tanh %154 : vector<1x32xf32>
    %cst_29 = arith.constant 1.000000e+00 : f32
    %156 = vector.broadcast %cst_29 : f32 to vector<1x32xf32>
    %157 = arith.subf %156, %150 : vector<1x32xf32>
    %158 = arith.mulf %157, %155 : vector<1x32xf32>
    %159 = arith.mulf %150, %134 : vector<1x32xf32>
    %160 = arith.addf %158, %159 : vector<1x32xf32>
    %c6 = arith.constant 6 : index
    %161 = memref.load %arg0[%c6] : memref<8xi32, #tpu.memory_space<smem>>
    %162 = arith.index_cast %161 : i32 to index
    %c0_30 = arith.constant 0 : index
    %163 = vector.load %arg1[%162, %c0_30] : memref<64x256xf32, #tpu.memory_space<vmem>>, vector<1x256xf32>
    %164 = arith.truncf %160 : vector<1x32xf32> to vector<1x32xbf16>
    %cst_31 = arith.constant dense<0.000000e+00> : vector<1x96xf32>
    %165 = tpu.matmul %164, %0, %cst_31 {dimension_numbers = #tpu.dot_dimension_numbers<[1], [0], [0], [1], [0, 0, 1, 1], [], []>} : vector<1x32xbf16>, vector<32x96xbf16>, vector<1x96xf32> -> vector<1x96xf32>
    %166 = arith.addf %165, %1 : vector<1x96xf32>
    %167 = vector.extract_strided_slice %163 {offsets = [0, 0], sizes = [1, 64], strides = [1, 1]} : vector<1x256xf32> to vector<1x64xf32>
    %168 = vector.extract_strided_slice %166 {offsets = [0, 0], sizes = [1, 64], strides = [1, 1]} : vector<1x96xf32> to vector<1x64xf32>
    %169 = arith.addf %167, %168 : vector<1x64xf32>
    %170 = arith.negf %169 : vector<1x64xf32>
    %171 = math.exp %170 : vector<1x64xf32>
    %cst_32 = arith.constant 1.000000e+00 : f32
    %172 = vector.broadcast %cst_32 : f32 to vector<1x64xf32>
    %173 = arith.addf %172, %171 : vector<1x64xf32>
    %174 = arith.divf %172, %173 : vector<1x64xf32>
    %175 = vector.extract_strided_slice %174 {offsets = [0, 0], sizes = [1, 32], strides = [1, 1]} : vector<1x64xf32> to vector<1x32xf32>
    %176 = vector.extract_strided_slice %174 {offsets = [0, 32], sizes = [1, 32], strides = [1, 1]} : vector<1x64xf32> to vector<1x32xf32>
    %177 = vector.extract_strided_slice %163 {offsets = [0, 64], sizes = [1, 32], strides = [1, 1]} : vector<1x256xf32> to vector<1x32xf32>
    %178 = vector.extract_strided_slice %166 {offsets = [0, 64], sizes = [1, 32], strides = [1, 1]} : vector<1x96xf32> to vector<1x32xf32>
    %179 = arith.mulf %175, %178 : vector<1x32xf32>
    %180 = arith.addf %177, %179 : vector<1x32xf32>
    %181 = math.tanh %180 : vector<1x32xf32>
    %cst_33 = arith.constant 1.000000e+00 : f32
    %182 = vector.broadcast %cst_33 : f32 to vector<1x32xf32>
    %183 = arith.subf %182, %176 : vector<1x32xf32>
    %184 = arith.mulf %183, %181 : vector<1x32xf32>
    %185 = arith.mulf %176, %160 : vector<1x32xf32>
    %186 = arith.addf %184, %185 : vector<1x32xf32>
    %c7 = arith.constant 7 : index
    %187 = memref.load %arg0[%c7] : memref<8xi32, #tpu.memory_space<smem>>
    %188 = arith.index_cast %187 : i32 to index
    %c0_34 = arith.constant 0 : index
    %189 = vector.load %arg1[%188, %c0_34] : memref<64x256xf32, #tpu.memory_space<vmem>>, vector<1x256xf32>
    %190 = arith.truncf %186 : vector<1x32xf32> to vector<1x32xbf16>
    %cst_35 = arith.constant dense<0.000000e+00> : vector<1x96xf32>
    %191 = tpu.matmul %190, %0, %cst_35 {dimension_numbers = #tpu.dot_dimension_numbers<[1], [0], [0], [1], [0, 0, 1, 1], [], []>} : vector<1x32xbf16>, vector<32x96xbf16>, vector<1x96xf32> -> vector<1x96xf32>
    %192 = arith.addf %191, %1 : vector<1x96xf32>
    %193 = vector.extract_strided_slice %189 {offsets = [0, 0], sizes = [1, 64], strides = [1, 1]} : vector<1x256xf32> to vector<1x64xf32>
    %194 = vector.extract_strided_slice %192 {offsets = [0, 0], sizes = [1, 64], strides = [1, 1]} : vector<1x96xf32> to vector<1x64xf32>
    %195 = arith.addf %193, %194 : vector<1x64xf32>
    %196 = arith.negf %195 : vector<1x64xf32>
    %197 = math.exp %196 : vector<1x64xf32>
    %cst_36 = arith.constant 1.000000e+00 : f32
    %198 = vector.broadcast %cst_36 : f32 to vector<1x64xf32>
    %199 = arith.addf %198, %197 : vector<1x64xf32>
    %200 = arith.divf %198, %199 : vector<1x64xf32>
    %201 = vector.extract_strided_slice %200 {offsets = [0, 0], sizes = [1, 32], strides = [1, 1]} : vector<1x64xf32> to vector<1x32xf32>
    %202 = vector.extract_strided_slice %200 {offsets = [0, 32], sizes = [1, 32], strides = [1, 1]} : vector<1x64xf32> to vector<1x32xf32>
    %203 = vector.extract_strided_slice %189 {offsets = [0, 64], sizes = [1, 32], strides = [1, 1]} : vector<1x256xf32> to vector<1x32xf32>
    %204 = vector.extract_strided_slice %192 {offsets = [0, 64], sizes = [1, 32], strides = [1, 1]} : vector<1x96xf32> to vector<1x32xf32>
    %205 = arith.mulf %201, %204 : vector<1x32xf32>
    %206 = arith.addf %203, %205 : vector<1x32xf32>
    %207 = math.tanh %206 : vector<1x32xf32>
    %cst_37 = arith.constant 1.000000e+00 : f32
    %208 = vector.broadcast %cst_37 : f32 to vector<1x32xf32>
    %209 = arith.subf %208, %202 : vector<1x32xf32>
    %210 = arith.mulf %209, %207 : vector<1x32xf32>
    %211 = arith.mulf %202, %186 : vector<1x32xf32>
    %212 = arith.addf %210, %211 : vector<1x32xf32>
    %213 = vector.extract_strided_slice %189 {offsets = [0, 128], sizes = [1, 64], strides = [1, 1]} : vector<1x256xf32> to vector<1x64xf32>
    %214 = arith.negf %213 : vector<1x64xf32>
    %215 = math.exp %214 : vector<1x64xf32>
    %cst_38 = arith.constant 1.000000e+00 : f32
    %216 = vector.broadcast %cst_38 : f32 to vector<1x64xf32>
    %217 = arith.addf %216, %215 : vector<1x64xf32>
    %218 = arith.divf %216, %217 : vector<1x64xf32>
    %219 = vector.extract_strided_slice %218 {offsets = [0, 0], sizes = [1, 32], strides = [1, 1]} : vector<1x64xf32> to vector<1x32xf32>
    %220 = vector.extract_strided_slice %218 {offsets = [0, 32], sizes = [1, 32], strides = [1, 1]} : vector<1x64xf32> to vector<1x32xf32>
    %221 = vector.extract_strided_slice %189 {offsets = [0, 192], sizes = [1, 32], strides = [1, 1]} : vector<1x256xf32> to vector<1x32xf32>
    %222 = arith.mulf %219, %2 : vector<1x32xf32>
    %223 = arith.addf %221, %222 : vector<1x32xf32>
    %224 = math.tanh %223 : vector<1x32xf32>
    %cst_39 = arith.constant 1.000000e+00 : f32
    %225 = vector.broadcast %cst_39 : f32 to vector<1x32xf32>
    %226 = arith.subf %225, %220 : vector<1x32xf32>
    %227 = arith.mulf %226, %224 : vector<1x32xf32>
    %228 = arith.addf %212, %227 : vector<1x32xf32>
    %229 = arith.truncf %228 : vector<1x32xf32> to vector<1x32xbf16>
    %c0_40 = arith.constant 0 : index
    %c0_41 = arith.constant 0 : index
    %230 = vector.load %arg4[%c0_40, %c0_41] : memref<32x16xbf16, #tpu.memory_space<vmem>>, vector<32x16xbf16>
    %cst_42 = arith.constant dense<0.000000e+00> : vector<1x16xf32>
    %231 = tpu.matmul %229, %230, %cst_42 {dimension_numbers = #tpu.dot_dimension_numbers<[1], [0], [0], [1], [0, 0, 1, 1], [], []>} : vector<1x32xbf16>, vector<32x16xbf16>, vector<1x16xf32> -> vector<1x16xf32>
    %232 = arith.addf %231, %3 : vector<1x16xf32>
    %233 = vector.extract_strided_slice %232 {offsets = [0, 0], sizes = [1, 8], strides = [1, 1]} : vector<1x16xf32> to vector<1x8xf32>
    %234 = vector.extract_strided_slice %232 {offsets = [0, 8], sizes = [1, 8], strides = [1, 1]} : vector<1x16xf32> to vector<1x8xf32>
    %cst_43 = arith.constant dense<0xFF800000> : vector<1xf32>
    %235 = vector.multi_reduction <maximumf>, %234, %cst_43 [1] : vector<1x8xf32> to vector<1xf32>
    %236 = vector.shape_cast %235 : vector<1xf32> to vector<1x1xf32>
    %237 = vector.broadcast %236 : vector<1x1xf32> to vector<1x8xf32>
    %238 = arith.subf %234, %237 : vector<1x8xf32>
    %239 = math.exp %238 : vector<1x8xf32>
    %cst_44 = arith.constant dense<0.000000e+00> : vector<1xf32>
    %240 = vector.multi_reduction <add>, %239, %cst_44 [1] : vector<1x8xf32> to vector<1xf32>
    %241 = vector.shape_cast %240 : vector<1xf32> to vector<1x1xf32>
    %242 = tpu.reciprocal %241 {approx = true} : vector<1x1xf32> -> vector<1x1xf32>
    %243 = vector.broadcast %242 : vector<1x1xf32> to vector<1x8xf32>
    %244 = arith.mulf %239, %243 : vector<1x8xf32>
    %cst_45 = arith.constant 9.99999997E-7 : f32
    %245 = vector.broadcast %cst_45 : f32 to vector<1x8xf32>
    %246 = arith.addf %244, %245 : vector<1x8xf32>
    %247 = tpu.concatenate %233, %246 in 1 : vector<1x8xf32>, vector<1x8xf32> -> vector<1x16xf32>
    %c0_46 = arith.constant 0 : index
    %c0_47 = arith.constant 0 : index
    %248 = vector.load %arg5[%c0_46, %c0_47] : memref<1x16xf32, #tpu.memory_space<vmem>>, vector<1x16xf32>
    tpu.vector_store %arg5[%c0_46, %c0_47], %247 {strides = array<i32>} : memref<1x16xf32, #tpu.memory_space<vmem>>, vector<1x16xf32>,
    return
  }
}

</mosaic_0001>

<llo_original>
// kernel: enc_txtrnn.1
$region0: #{enc_txtrnn.1}
  #allocation0 [shape = 'u32[]', space=smem, size = 0x4, offset = 0x4, fixed_abs, tag = 'smem constant byte address 0x4 - core index']
  #allocation1 [shape = 'u32[144,128]{1,0:T(1,128)}', space=vmem, size = 0x12000, scoped, tag = 'internal scratch']
  %s0 = inlined_call_operand.vmem [shape: s32[8], index: 0, kind: input, shape index: {}]
  %s1 = inlined_call_operand.vmem [shape: f32[64,256], index: 1, kind: input, shape index: {}]
  %s2 = inlined_call_operand.vmem [shape: bf16[32,96], index: 2, kind: input, shape index: {}]
  %s3 = inlined_call_operand.vmem [shape: f32[1,144], index: 3, kind: input, shape index: {}]
  %s4 = inlined_call_operand.vmem [shape: bf16[32,16], index: 4, kind: input, shape index: {}]
  %s5 = inlined_call_operand.vmem [shape: f32[1,16], index: 5, kind: output, shape index: {}]
  %s6 = sld [smem:[#allocation0]]
  $region34: #{enc_txtrnn.1} parent=0
    _
  %s8 = ssub.s32 1, %s6
  %s9 = scalar_select 0, %s8, %s6
  $region1: #{enc_txtrnn.1} parent=0
    #allocation2 [shape = 'u8[512]{0}', space=smem, size = 0x200, scoped, tag = 'input window, operand 0, single buffered']
    #allocation3 [shape = 's32[1]{0}', space=sflag, size = 0x4, scoped, tag = 'scoped memory for enc_txtrnn.1']
    %10 = vsyncpa [#allocation3], 0
    // Predicated region
    $region2: #{enc_txtrnn.1} parent=1 // pred_check
      _
    $region3: #{enc_txtrnn.1} parent=1 // pred_check_branch
      %12 = sbr.rel (0) target = $region5
    $region4: #{enc_txtrnn.1} parent=1 // pred_region
      %s14 = ssub.s32 16, 16
      %15 = vsyncadd [#allocation3], %s14
      %s17 = sshll.u32 %s0, 4
      %s18 = int_to_ptr.vmem [resolvable:$true] %s17
      %20 = dma.vmem_to_smem %s18, 16, [#allocation2], [#allocation3]
    $region5: #{enc_txtrnn.1} parent=1 // pred_fallthru
      _
    // Predicated region
    $region6: #{enc_txtrnn.1} parent=1 // pred_check
      _
    $region7: #{enc_txtrnn.1} parent=1 // pred_check_branch
      %22 = sbr.rel (0) target = $region9
    $region8: #{enc_txtrnn.1} parent=1 // pred_region
      _
    $region9: #{enc_txtrnn.1} parent=1 // pred_fallthru
      _
    // Predicated region
    $region10: #{enc_txtrnn.1} parent=1 // pred_check
      _
    $region11: #{enc_txtrnn.1} parent=1 // pred_check_branch
      %24 = sbr.rel (0) target = $region13
    $region12: #{enc_txtrnn.1} parent=1 // pred_region
      _
    $region13: #{enc_txtrnn.1} parent=1 // pred_fallthru
      _
    // Predicated region
    $region14: #{enc_txtrnn.1} parent=1 // pred_check
      _
    $region15: #{enc_txtrnn.1} parent=1 // pred_check_branch
      %26 = sbr.rel (0) target = $region17
    $region16: #{enc_txtrnn.1} parent=1 // pred_region
      _
    $region17: #{enc_txtrnn.1} parent=1 // pred_fallthru
      _
    // Predicated region
    $region18: #{enc_txtrnn.1} parent=1 // pred_check
      _
    $region19: #{enc_txtrnn.1} parent=1 // pred_check_branch
      %28 = sbr.rel (0) target = $region21
    $region20: #{enc_txtrnn.1} parent=1 // pred_region
      _
    $region21: #{enc_txtrnn.1} parent=1 // pred_fallthru
      _
    // Predicated region
    $region22: #{enc_txtrnn.1} parent=1 // pred_check
      _
    $region23: #{enc_txtrnn.1} parent=1 // pred_check_branch
      %30 = sbr.rel (0) target = $region25
    $region24: #{enc_txtrnn.1} parent=1 // pred_region
      %31 = dma.done [#allocation3], 16
    $region25: #{enc_txtrnn.1} parent=1 // pred_fallthru
      _
    %32 = sfence
    %v34 = vld [vmem:[%s2] sm:$0xf]
    %v35 = vld [vmem:[%s2 + $0x4] sm:$0xf]
    %v36 = vld [vmem:[%s2 + $0x8] sm:$0xf]
    %v37 = vld [vmem:[%s2 + $0xc] sm:$0xf]
    %v38 = vld [vmem:[%s3] sm:$0x1]
    %v39 = vld [vmem:[%s3 + $0x1] sm:$0x1]
    %s40 = sld [smem:[#allocation2]]
    %s41 = sshra.s32 %s40, 3
    %s42 = sand.u32 %s40, 7
    %s43 = sshra.s32 %s40, 3
    %s44 = sand.u32 %s40, 7
    %s45 = smul.u32 %s41, 2
    %s46 = smul.u32 %s45, 8
    %s47 = sadd.s32 %s46, %s44
    %s48 = scalar_lea.vmem %s1, %s47
    %v49 = vld [vmem:[%s48] ss:$8 sm:$0x3]
    %v54 = vunpack.c.l.b16 %v34
    %v55 = vunpack.c.l.b16 %v35
    %v56 = vunpack.c.l.b16 %v36
    %v57 = vunpack.c.l.b16 %v37
    %v58 = vpack.c.b16 %v55, %v54
    %v59 = vpack.c.b16 %v57, %v56
    %vm62 = vcmask 261120
    %v64 = vsel %vm62, 0, 0
    %66 = vmatprep.subr.bf16.mxu0 0
    %67 = vmatpush1.bf16.msra.mxu0 %v58
    %68 = vmatprep.subr.bf16.mxu0 0
    %69 = vmatpush1.bf16.msra.mxu0 %v59
    %70 = vmatprep.subr.bf16.mxu0 0
    %71 = vmatpush1.bf16.msra.mxu0 0
    %72 = vmatprep.subr.bf16.mxu0 0
    %73 = vmatpush1.bf16.msra.mxu0 0
    %74 = vmatprep.subr.bf16.mxu0 0
    %75 = vmatpush1.bf16.msra.mxu0 0
    %76 = vmatprep.subr.bf16.mxu0 0
    %77 = vmatpush1.bf16.msra.mxu0 0
    %78 = vmatprep.subr.bf16.mxu0 0
    %79 = vmatpush1.bf16.msra.mxu0 0
    %80 = vmatprep.subr.bf16.mxu0 0
    %81 = vmatpush1.bf16.msra.mxu0 0
    %82 = vmatprep.subr.bf16.mxu0 0
    %83 = vmatpush1.bf16.msra.mxu0 0
    %84 = vmatprep.subr.bf16.mxu0 0
    %85 = vmatpush1.bf16.msra.mxu0 0
    %86 = vmatprep.subr.bf16.mxu0 0
    %87 = vmatpush1.bf16.msra.mxu0 0
    %88 = vmatprep.subr.bf16.mxu0 0
    %89 = vmatpush1.bf16.msra.mxu0 0
    %90 = vmatprep.subr.bf16.mxu0 0
    %91 = vmatpush1.bf16.msra.mxu0 0
    %92 = vmatprep.subr.bf16.mxu0 0
    %93 = vmatpush1.bf16.msra.mxu0 0
    %94 = vmatprep.subr.bf16.mxu0 0
    %95 = vmatpush1.bf16.msra.mxu0 0
    %96 = vmatprep.subr.bf16.mxu0 0
    %97 = vmatpush1.bf16.msra.mxu0 0
    %98 = vmatprep.mubr.bf16.mxu0 0
    %99 = vmatmul.mubr.bf16.gmra.mrb[0].mxu0 %v64
    %v100 = vpop.f32.mrb[0].mxu0
    %v101 = vadd.f32 %v38, %v100
    %v102 = vpop.f32.mrb[0].mxu0
    %v103 = vpop.f32.mrb[0].mxu0
    %v104 = vpop.f32.mrb[0].mxu0
    %105 = vdwg.mxu0
    %v106 = vadd.f32 %v49, %v101
    %v107 = vxor.u32 %v106, 2147483648
    %v108 = vmul.f32 %v107, 1.442695
    %v109 = vpow.pop %v108
    %v110 = vadd.f32 %v109, 1.0
    %v111 = vrcp.pop %v110
    %v112 = vmul.f32 1.0, %v111
    %v115 = vunpack.c.l.s4 1966171168
    %v116 = vunpack.c.0.s8 %v115
    %v117 = vlaneseq
    %v118 = vshrl.u32 %v117, 7
    %v119 = vsub.s32 %v116, %v118
    %v120 = vrot.slane %v101, %v119
    %v122 = vunpack.c.l.s4 1966171168
    %v123 = vunpack.c.0.s8 %v122
    %v124 = vlaneseq
    %v125 = vshrl.u32 %v124, 7
    %v126 = vsub.s32 %v123, %v125
    %v127 = vrot.slane %v120, %v126
    %128 = vrot.lane.b32.xlu0 %v127, 64
    %v129 = vpop.permute.xlu0 %128
    %v131 = vmul.f32 %v112, %v129
    %133 = vrot.lane.b32.xlu0 %v131, 64
    %v134 = vpop.permute.xlu0 %133
    %v136 = vadd.f32 %v49, %v134
    %v137 = vtanh.pop %v136
    %v138 = vsub.f32 1.0, %v112
    %140 = vrot.lane.b32.xlu0 %v137, 96
    %v141 = vpop.permute.xlu0 %140
    %v143 = vmul.f32 %v138, %v141
    %v144 = vmul.f32 %v112, 0.0
    %v145 = vadd.f32 %v143, %v144
    %s146 = sld [smem:[#allocation2 + $0x1]]
    %s147 = sshra.s32 %s146, 3
    %s148 = sand.u32 %s146, 7
    %s149 = sshra.s32 %s146, 3
    %s150 = sand.u32 %s146, 7
    %s151 = smul.u32 %s147, 2
    %s152 = smul.u32 %s151, 8
    %s153 = sadd.s32 %s152, %s150
    %s154 = scalar_lea.vmem %s1, %s153
    %v155 = vld [vmem:[%s154] ss:$8 sm:$0x3]
    %v156 = vpack.c.bf16 %v145, %v145
    %158 = vrot.lane.b32.xlu0 %v156, 96
    %v159 = vpop.permute.xlu0 %158
    %v161 = vsel %vm62, %v159, 0
    %163 = vmatprep.subr.bf16.mxu0 0
    %164 = vmatpush1.bf16.msra.mxu0 %v58
    %165 = vmatprep.subr.bf16.mxu0 0
    %166 = vmatpush1.bf16.msra.mxu0 %v59
    %167 = vmatprep.subr.bf16.mxu0 0
    %168 = vmatpush1.bf16.msra.mxu0 0
    %169 = vmatprep.subr.bf16.mxu0 0
    %170 = vmatpush1.bf16.msra.mxu0 0
    %171 = vmatprep.subr.bf16.mxu0 0
    %172 = vmatpush1.bf16.msra.mxu0 0
    %173 = vmatprep.subr.bf16.mxu0 0
    %174 = vmatpush1.bf16.msra.mxu0 0
    %175 = vmatprep.subr.bf16.mxu0 0
    %176 = vmatpush1.bf16.msra.mxu0 0
    %177 = vmatprep.subr.bf16.mxu0 0
    %178 = vmatpush1.bf16.msra.mxu0 0
    %179 = vmatprep.subr.bf16.mxu0 0
    %180 = vmatpush1.bf16.msra.mxu0 0
    %181 = vmatprep.subr.bf16.mxu0 0
    %182 = vmatpush1.bf16.msra.mxu0 0
    %183 = vmatprep.subr.bf16.mxu0 0
    %184 = vmatpush1.bf16.msra.mxu0 0
    %185 = vmatprep.subr.bf16.mxu0 0
    %186 = vmatpush1.bf16.msra.mxu0 0
    %187 = vmatprep.subr.bf16.mxu0 0
    %188 = vmatpush1.bf16.msra.mxu0 0
    %189 = vmatprep.subr.bf16.mxu0 0
    %190 = vmatpush1.bf16.msra.mxu0 0
    %191 = vmatprep.subr.bf16.mxu0 0
    %192 = vmatpush1.bf16.msra.mxu0 0
    %193 = vmatprep.subr.bf16.mxu0 0
    %194 = vmatpush1.bf16.msra.mxu0 0
    %195 = vmatprep.mubr.bf16.mxu0 0
    %196 = vmatmul.mubr.bf16.gmra.mrb[0].mxu0 %v161
    %v197 = vpop.f32.mrb[0].mxu0
    %v198 = vadd.f32 %v38, %v197
    %v199 = vpop.f32.mrb[0].mxu0
    %v200 = vpop.f32.mrb[0].mxu0
    %v201 = vpop.f32.mrb[0].mxu0
    %202 = vdwg.mxu0
    %v203 = vadd.f32 %v155, %v198
    %v204 = vxor.u32 %v203, 2147483648
    %v205 = vmul.f32 %v204, 1.442695
    %v206 = vpow.pop %v205
    %v207 = vadd.f32 %v206, 1.0
    %v208 = vrcp.pop %v207
    %v209 = vmul.f32 1.0, %v208
    %v212 = vunpack.c.l.s4 1966171168
    %v213 = vunpack.c.0.s8 %v212
    %v214 = vlaneseq
    %v215 = vshrl.u32 %v214, 7
    %v216 = vsub.s32 %v213, %v215
    %v217 = vrot.slane %v198, %v216
    %v219 = vunpack.c.l.s4 1966171168
    %v220 = vunpack.c.0.s8 %v219
    %v221 = vlaneseq
    %v222 = vshrl.u32 %v221, 7
    %v223 = vsub.s32 %v220, %v222
    %v224 = vrot.slane %v217, %v223
    %225 = vrot.lane.b32.xlu0 %v224, 64
    %v226 = vpop.permute.xlu0 %225
    %v228 = vmul.f32 %v209, %v226
    %230 = vrot.lane.b32.xlu0 %v228, 64
    %v231 = vpop.permute.xlu0 %230
    %v233 = vadd.f32 %v155, %v231
    %v234 = vtanh.pop %v233
    %v235 = vsub.f32 1.0, %v209
    %237 = vrot.lane.b32.xlu0 %v234, 96
    %v238 = vpop.permute.xlu0 %237
    %v240 = vmul.f32 %v235, %v238
    %v241 = vmul.f32 %v209, %v145
    %v242 = vadd.f32 %v240, %v241
    %s243 = sld [smem:[#allocation2 + $0x2]]
    %s244 = sshra.s32 %s243, 3
    %s245 = sand.u32 %s243, 7
    %s246 = sshra.s32 %s243, 3
    %s247 = sand.u32 %s243, 7
    %s248 = smul.u32 %s244, 2
    %s249 = smul.u32 %s248, 8
    %s250 = sadd.s32 %s249, %s247
    %s251 = scalar_lea.vmem %s1, %s250
    %v252 = vld [vmem:[%s251] ss:$8 sm:$0x3]
    %v253 = vpack.c.bf16 %v242, %v242
    %255 = vrot.lane.b32.xlu0 %v253, 96
    %v256 = vpop.permute.xlu0 %255
    %v258 = vsel %vm62, %v256, 0
    %260 = vmatprep.subr.bf16.mxu0 0
    %261 = vmatpush1.bf16.msra.mxu0 %v58
    %262 = vmatprep.subr.bf16.mxu0 0
    %263 = vmatpush1.bf16.msra.mxu0 %v59
    %264 = vmatprep.subr.bf16.mxu0 0
    %265 = vmatpush1.bf16.msra.mxu0 0
    %266 = vmatprep.subr.bf16.mxu0 0
    %267 = vmatpush1.bf16.msra.mxu0 0
    %268 = vmatprep.subr.bf16.mxu0 0
    %269 = vmatpush1.bf16.msra.mxu0 0
    %270 = vmatprep.subr.bf16.mxu0 0
    %271 = vmatpush1.bf16.msra.mxu0 0
    %272 = vmatprep.subr.bf16.mxu0 0
    %273 = vmatpush1.bf16.msra.mxu0 0
    %274 = vmatprep.subr.bf16.mxu0 0
    %275 = vmatpush1.bf16.msra.mxu0 0
    %276 = vmatprep.subr.bf16.mxu0 0
    %277 = vmatpush1.bf16.msra.mxu0 0
    %278 = vmatprep.subr.bf16.mxu0 0
    %279 = vmatpush1.bf16.msra.mxu0 0
    %280 = vmatprep.subr.bf16.mxu0 0
    %281 = vmatpush1.bf16.msra.mxu0 0
    %282 = vmatprep.subr.bf16.mxu0 0
    %283 = vmatpush1.bf16.msra.mxu0 0
    %284 = vmatprep.subr.bf16.mxu0 0
    %285 = vmatpush1.bf16.msra.mxu0 0
    %286 = vmatprep.subr.bf16.mxu0 0
    %287 = vmatpush1.bf16.msra.mxu0 0
    %288 = vmatprep.subr.bf16.mxu0 0
    %289 = vmatpush1.bf16.msra.mxu0 0
    %290 = vmatprep.subr.bf16.mxu0 0
    %291 = vmatpush1.bf16.msra.mxu0 0
    %292 = vmatprep.mubr.bf16.mxu0 0
    %293 = vmatmul.mubr.bf16.gmra.mrb[0].mxu0 %v258
    %v294 = vpop.f32.mrb[0].mxu0
    %v295 = vadd.f32 %v38, %v294
    %v296 = vpop.f32.mrb[0].mxu0
    %v297 = vpop.f32.mrb[0].mxu0
    %v298 = vpop.f32.mrb[0].mxu0
    %299 = vdwg.mxu0
    %v300 = vadd.f32 %v252, %v295
    %v301 = vxor.u32 %v300, 2147483648
    %v302 = vmul.f32 %v301, 1.442695
    %v303 = vpow.pop %v302
    %v304 = vadd.f32 %v303, 1.0
    %v305 = vrcp.pop %v304
    %v306 = vmul.f32 1.0, %v305
    %v309 = vunpack.c.l.s4 1966171168
    %v310 = vunpack.c.0.s8 %v309
    %v311 = vlaneseq
    %v312 = vshrl.u32 %v311, 7
    %v313 = vsub.s32 %v310, %v312
    %v314 = vrot.slane %v295, %v313
    %v316 = vunpack.c.l.s4 1966171168
    %v317 = vunpack.c.0.s8 %v316
    %v318 = vlaneseq
    %v319 = vshrl.u32 %v318, 7
    %v320 = vsub.s32 %v317, %v319
    %v321 = vrot.slane %v314, %v320
    %322 = vrot.lane.b32.xlu0 %v321, 64
    %v323 = vpop.permute.xlu0 %322
    %v325 = vmul.f32 %v306, %v323
    %327 = vrot.lane.b32.xlu0 %v325, 64
    %v328 = vpop.permute.xlu0 %327
    %v330 = vadd.f32 %v252, %v328
    %v331 = vtanh.pop %v330
    %v332 = vsub.f32 1.0, %v306
    %334 = vrot.lane.b32.xlu0 %v331, 96
    %v335 = vpop.permute.xlu0 %334
    %v337 = vmul.f32 %v332, %v335
    %v338 = vmul.f32 %v306, %v242
    %v339 = vadd.f32 %v337, %v338
    %s340 = sld [smem:[#allocation2 + $0x3]]
    %s341 = sshra.s32 %s340, 3
    %s342 = sand.u32 %s340, 7
    %s343 = sshra.s32 %s340, 3
    %s344 = sand.u32 %s340, 7
    %s345 = smul.u32 %s341, 2
    %s346 = smul.u32 %s345, 8
    %s347 = sadd.s32 %s346, %s344
    %s348 = scalar_lea.vmem %s1, %s347
    %v349 = vld [vmem:[%s348] ss:$8 sm:$0x3]
    %v350 = vpack.c.bf16 %v339, %v339
    %352 = vrot.lane.b32.xlu0 %v350, 96
    %v353 = vpop.permute.xlu0 %352
    %v355 = vsel %vm62, %v353, 0
    %357 = vmatprep.subr.bf16.mxu0 0
    %358 = vmatpush1.bf16.msra.mxu0 %v58
    %359 = vmatprep.subr.bf16.mxu0 0
    %360 = vmatpush1.bf16.msra.mxu0 %v59
    %361 = vmatprep.subr.bf16.mxu0 0
    %362 = vmatpush1.bf16.msra.mxu0 0
    %363 = vmatprep.subr.bf16.mxu0 0
    %364 = vmatpush1.bf16.msra.mxu0 0
    %365 = vmatprep.subr.bf16.mxu0 0
    %366 = vmatpush1.bf16.msra.mxu0 0
    %367 = vmatprep.subr.bf16.mxu0 0
    %368 = vmatpush1.bf16.msra.mxu0 0
    %369 = vmatprep.subr.bf16.mxu0 0
    %370 = vmatpush1.bf16.msra.mxu0 0
    %371 = vmatprep.subr.bf16.mxu0 0
    %372 = vmatpush1.bf16.msra.mxu0 0
    %373 = vmatprep.subr.bf16.mxu0 0
    %374 = vmatpush1.bf16.msra.mxu0 0
    %375 = vmatprep.subr.bf16.mxu0 0
    %376 = vmatpush1.bf16.msra.mxu0 0
    %377 = vmatprep.subr.bf16.mxu0 0
    %378 = vmatpush1.bf16.msra.mxu0 0
    %379 = vmatprep.subr.bf16.mxu0 0
    %380 = vmatpush1.bf16.msra.mxu0 0
    %381 = vmatprep.subr.bf16.mxu0 0
    %382 = vmatpush1.bf16.msra.mxu0 0
    %383 = vmatprep.subr.bf16.mxu0 0
    %384 = vmatpush1.bf16.msra.mxu0 0
    %385 = vmatprep.subr.bf16.mxu0 0
    %386 = vmatpush1.bf16.msra.mxu0 0
    %387 = vmatprep.subr.bf16.mxu0 0
    %388 = vmatpush1.bf16.msra.mxu0 0
    %389 = vmatprep.mubr.bf16.mxu0 0
    %390 = vmatmul.mubr.bf16.gmra.mrb[0].mxu0 %v355
    %v391 = vpop.f32.mrb[0].mxu0
    %v392 = vadd.f32 %v38, %v391
    %v393 = vpop.f32.mrb[0].mxu0
    %v394 = vpop.f32.mrb[0].mxu0
    %v395 = vpop.f32.mrb[0].mxu0
    %396 = vdwg.mxu0
    %v397 = vadd.f32 %v349, %v392
    %v398 = vxor.u32 %v397, 2147483648
    %v399 = vmul.f32 %v398, 1.442695
    %v400 = vpow.pop %v399
    %v401 = vadd.f32 %v400, 1.0
    %v402 = vrcp.pop %v401
    %v403 = vmul.f32 1.0, %v402
    %v406 = vunpack.c.l.s4 1966171168
    %v407 = vunpack.c.0.s8 %v406
    %v408 = vlaneseq
    %v409 = vshrl.u32 %v408, 7
    %v410 = vsub.s32 %v407, %v409
    %v411 = vrot.slane %v392, %v410
    %v413 = vunpack.c.l.s4 1966171168
    %v414 = vunpack.c.0.s8 %v413
    %v415 = vlaneseq
    %v416 = vshrl.u32 %v415, 7
    %v417 = vsub.s32 %v414, %v416
    %v418 = vrot.slane %v411, %v417
    %419 = vrot.lane.b32.xlu0 %v418, 64
    %v420 = vpop.permute.xlu0 %419
    %v422 = vmul.f32 %v403, %v420
    %424 = vrot.lane.b32.xlu0 %v422, 64
    %v425 = vpop.permute.xlu0 %424
    %v427 = vadd.f32 %v349, %v425
    %v428 = vtanh.pop %v427
    %v429 = vsub.f32 1.0, %v403
    %431 = vrot.lane.b32.xlu0 %v428, 96
    %v432 = vpop.permute.xlu0 %431
    %v434 = vmul.f32 %v429, %v432
    %v435 = vmul.f32 %v403, %v339
    %v436 = vadd.f32 %v434, %v435
    %s437 = sld [smem:[#allocation2 + $0x4]]
    %s438 = sshra.s32 %s437, 3
    %s439 = sand.u32 %s437, 7
    %s440 = sshra.s32 %s437, 3
    %s441 = sand.u32 %s437, 7
    %s442 = smul.u32 %s438, 2
    %s443 = smul.u32 %s442, 8
    %s444 = sadd.s32 %s443, %s441
    %s445 = scalar_lea.vmem %s1, %s444
    %v446 = vld [vmem:[%s445] ss:$8 sm:$0x3]
    %v447 = vpack.c.bf16 %v436, %v436
    %449 = vrot.lane.b32.xlu0 %v447, 96
    %v450 = vpop.permute.xlu0 %449
    %v452 = vsel %vm62, %v450, 0
    %454 = vmatprep.subr.bf16.mxu0 0
    %455 = vmatpush1.bf16.msra.mxu0 %v58
    %456 = vmatprep.subr.bf16.mxu0 0
    %457 = vmatpush1.bf16.msra.mxu0 %v59
    %458 = vmatprep.subr.bf16.mxu0 0
    %459 = vmatpush1.bf16.msra.mxu0 0
    %460 = vmatprep.subr.bf16.mxu0 0
    %461 = vmatpush1.bf16.msra.mxu0 0
    %462 = vmatprep.subr.bf16.mxu0 0
    %463 = vmatpush1.bf16.msra.mxu0 0
    %464 = vmatprep.subr.bf16.mxu0 0
    %465 = vmatpush1.bf16.msra.mxu0 0
    %466 = vmatprep.subr.bf16.mxu0 0
    %467 = vmatpush1.bf16.msra.mxu0 0
    %468 = vmatprep.subr.bf16.mxu0 0
    %469 = vmatpush1.bf16.msra.mxu0 0
    %470 = vmatprep.subr.bf16.mxu0 0
    %471 = vmatpush1.bf16.msra.mxu0 0
    %472 = vmatprep.subr.bf16.mxu0 0
    %473 = vmatpush1.bf16.msra.mxu0 0
    %474 = vmatprep.subr.bf16.mxu0 0
    %475 = vmatpush1.bf16.msra.mxu0 0
    %476 = vmatprep.subr.bf16.mxu0 0
    %477 = vmatpush1.bf16.msra.mxu0 0
    %478 = vmatprep.subr.bf16.mxu0 0
    %479 = vmatpush1.bf16.msra.mxu0 0
    %480 = vmatprep.subr.bf16.mxu0 0
    %481 = vmatpush1.bf16.msra.mxu0 0
    %482 = vmatprep.subr.bf16.mxu0 0
    %483 = vmatpush1.bf16.msra.mxu0 0
    %484 = vmatprep.subr.bf16.mxu0 0
    %485 = vmatpush1.bf16.msra.mxu0 0
    %486 = vmatprep.mubr.bf16.mxu0 0
    %487 = vmatmul.mubr.bf16.gmra.mrb[0].mxu0 %v452
    %v488 = vpop.f32.mrb[0].mxu0
    %v489 = vadd.f32 %v38, %v488
    %v490 = vpop.f32.mrb[0].mxu0
    %v491 = vpop.f32.mrb[0].mxu0
    %v492 = vpop.f32.mrb[0].mxu0
    %493 = vdwg.mxu0
    %v494 = vadd.f32 %v446, %v489
    %v495 = vxor.u32 %v494, 2147483648
    %v496 = vmul.f32 %v495, 1.442695
    %v497 = vpow.pop %v496
    %v498 = vadd.f32 %v497, 1.0
    %v499 = vrcp.pop %v498
    %v500 = vmul.f32 1.0, %v499
    %v503 = vunpack.c.l.s4 1966171168
    %v504 = vunpack.c.0.s8 %v503
    %v505 = vlaneseq
    %v506 = vshrl.u32 %v505, 7
    %v507 = vsub.s32 %v504, %v506
    %v508 = vrot.slane %v489, %v507
    %v510 = vunpack.c.l.s4 1966171168
    %v511 = vunpack.c.0.s8 %v510
    %v512 = vlaneseq
    %v513 = vshrl.u32 %v512, 7
    %v514 = vsub.s32 %v511, %v513
    %v515 = vrot.slane %v508, %v514
    %516 = vrot.lane.b32.xlu0 %v515, 64
    %v517 = vpop.permute.xlu0 %516
    %v519 = vmul.f32 %v500, %v517
    %521 = vrot.lane.b32.xlu0 %v519, 64
    %v522 = vpop.permute.xlu0 %521
    %v524 = vadd.f32 %v446, %v522
    %v525 = vtanh.pop %v524
    %v526 = vsub.f32 1.0, %v500
    %528 = vrot.lane.b32.xlu0 %v525, 96
    %v529 = vpop.permute.xlu0 %528
    %v531 = vmul.f32 %v526, %v529
    %v532 = vmul.f32 %v500, %v436
    %v533 = vadd.f32 %v531, %v532
    %s534 = sld [smem:[#allocation2 + $0x5]]
    %s535 = sshra.s32 %s534, 3
    %s536 = sand.u32 %s534, 7
    %s537 = sshra.s32 %s534, 3
    %s538 = sand.u32 %s534, 7
    %s539 = smul.u32 %s535, 2
    %s540 = smul.u32 %s539, 8
    %s541 = sadd.s32 %s540, %s538
    %s542 = scalar_lea.vmem %s1, %s541
    %v543 = vld [vmem:[%s542] ss:$8 sm:$0x3]
    %v544 = vpack.c.bf16 %v533, %v533
    %546 = vrot.lane.b32.xlu0 %v544, 96
    %v547 = vpop.permute.xlu0 %546
    %v549 = vsel %vm62, %v547, 0
    %551 = vmatprep.subr.bf16.mxu0 0
    %552 = vmatpush1.bf16.msra.mxu0 %v58
    %553 = vmatprep.subr.bf16.mxu0 0
    %554 = vmatpush1.bf16.msra.mxu0 %v59
    %555 = vmatprep.subr.bf16.mxu0 0
    %556 = vmatpush1.bf16.msra.mxu0 0
    %557 = vmatprep.subr.bf16.mxu0 0
    %558 = vmatpush1.bf16.msra.mxu0 0
    %559 = vmatprep.subr.bf16.mxu0 0
    %560 = vmatpush1.bf16.msra.mxu0 0
    %561 = vmatprep.subr.bf16.mxu0 0
    %562 = vmatpush1.bf16.msra.mxu0 0
    %563 = vmatprep.subr.bf16.mxu0 0
    %564 = vmatpush1.bf16.msra.mxu0 0
    %565 = vmatprep.subr.bf16.mxu0 0
    %566 = vmatpush1.bf16.msra.mxu0 0
    %567 = vmatprep.subr.bf16.mxu0 0
    %568 = vmatpush1.bf16.msra.mxu0 0
    %569 = vmatprep.subr.bf16.mxu0 0
    %570 = vmatpush1.bf16.msra.mxu0 0
    %571 = vmatprep.subr.bf16.mxu0 0
    %572 = vmatpush1.bf16.msra.mxu0 0
    %573 = vmatprep.subr.bf16.mxu0 0
    %574 = vmatpush1.bf16.msra.mxu0 0
    %575 = vmatprep.subr.bf16.mxu0 0
    %576 = vmatpush1.bf16.msra.mxu0 0
    %577 = vmatprep.subr.bf16.mxu0 0
    %578 = vmatpush1.bf16.msra.mxu0 0
    %579 = vmatprep.subr.bf16.mxu0 0
    %580 = vmatpush1.bf16.msra.mxu0 0
    %581 = vmatprep.subr.bf16.mxu0 0
    %582 = vmatpush1.bf16.msra.mxu0 0
    %583 = vmatprep.mubr.bf16.mxu0 0
    %584 = vmatmul.mubr.bf16.gmra.mrb[0].mxu0 %v549
    %v585 = vpop.f32.mrb[0].mxu0
    %v586 = vadd.f32 %v38, %v585
    %v587 = vpop.f32.mrb[0].mxu0
    %v588 = vpop.f32.mrb[0].mxu0
    %v589 = vpop.f32.mrb[0].mxu0
    %590 = vdwg.mxu0
    %v591 = vadd.f32 %v543, %v586
    %v592 = vxor.u32 %v591, 2147483648
    %v593 = vmul.f32 %v592, 1.442695
    %v594 = vpow.pop %v593
    %v595 = vadd.f32 %v594, 1.0
    %v596 = vrcp.pop %v595
    %v597 = vmul.f32 1.0, %v596
    %v600 = vunpack.c.l.s4 1966171168
    %v601 = vunpack.c.0.s8 %v600
    %v602 = vlaneseq
    %v603 = vshrl.u32 %v602, 7
    %v604 = vsub.s32 %v601, %v603
    %v605 = vrot.slane %v586, %v604
    %v607 = vunpack.c.l.s4 1966171168
    %v608 = vunpack.c.0.s8 %v607
    %v609 = vlaneseq
    %v610 = vshrl.u32 %v609, 7
    %v611 = vsub.s32 %v608, %v610
    %v612 = vrot.slane %v605, %v611
    %613 = vrot.lane.b32.xlu0 %v612, 64
    %v614 = vpop.permute.xlu0 %613
    %v616 = vmul.f32 %v597, %v614
    %618 = vrot.lane.b32.xlu0 %v616, 64
    %v619 = vpop.permute.xlu0 %618
    %v621 = vadd.f32 %v543, %v619
    %v622 = vtanh.pop %v621
    %v623 = vsub.f32 1.0, %v597
    %625 = vrot.lane.b32.xlu0 %v622, 96
    %v626 = vpop.permute.xlu0 %625
    %v628 = vmul.f32 %v623, %v626
    %v629 = vmul.f32 %v597, %v533
    %v630 = vadd.f32 %v628, %v629
    %s631 = sld [smem:[#allocation2 + $0x6]]
    %s632 = sshra.s32 %s631, 3
    %s633 = sand.u32 %s631, 7
    %s634 = sshra.s32 %s631, 3
    %s635 = sand.u32 %s631, 7
    %s636 = smul.u32 %s632, 2
    %s637 = smul.u32 %s636, 8
    %s638 = sadd.s32 %s637, %s635
    %s639 = scalar_lea.vmem %s1, %s638
    %v640 = vld [vmem:[%s639] ss:$8 sm:$0x3]
    %v641 = vpack.c.bf16 %v630, %v630
    %643 = vrot.lane.b32.xlu0 %v641, 96
    %v644 = vpop.permute.xlu0 %643
    %v646 = vsel %vm62, %v644, 0
    %648 = vmatprep.subr.bf16.mxu0 0
    %649 = vmatpush1.bf16.msra.mxu0 %v58
    %650 = vmatprep.subr.bf16.mxu0 0
    %651 = vmatpush1.bf16.msra.mxu0 %v59
    %652 = vmatprep.subr.bf16.mxu0 0
    %653 = vmatpush1.bf16.msra.mxu0 0
    %654 = vmatprep.subr.bf16.mxu0 0
    %655 = vmatpush1.bf16.msra.mxu0 0
    %656 = vmatprep.subr.bf16.mxu0 0
    %657 = vmatpush1.bf16.msra.mxu0 0
    %658 = vmatprep.subr.bf16.mxu0 0
    %659 = vmatpush1.bf16.msra.mxu0 0
    %660 = vmatprep.subr.bf16.mxu0 0
    %661 = vmatpush1.bf16.msra.mxu0 0
    %662 = vmatprep.subr.bf16.mxu0 0
    %663 = vmatpush1.bf16.msra.mxu0 0
    %664 = vmatprep.subr.bf16.mxu0 0
    %665 = vmatpush1.bf16.msra.mxu0 0
    %666 = vmatprep.subr.bf16.mxu0 0
    %667 = vmatpush1.bf16.msra.mxu0 0
    %668 = vmatprep.subr.bf16.mxu0 0
    %669 = vmatpush1.bf16.msra.mxu0 0
    %670 = vmatprep.subr.bf16.mxu0 0
    %671 = vmatpush1.bf16.msra.mxu0 0
    %672 = vmatprep.subr.bf16.mxu0 0
    %673 = vmatpush1.bf16.msra.mxu0 0
    %674 = vmatprep.subr.bf16.mxu0 0
    %675 = vmatpush1.bf16.msra.mxu0 0
    %676 = vmatprep.subr.bf16.mxu0 0
    %677 = vmatpush1.bf16.msra.mxu0 0
    %678 = vmatprep.subr.bf16.mxu0 0
    %679 = vmatpush1.bf16.msra.mxu0 0
    %680 = vmatprep.mubr.bf16.mxu0 0
    %681 = vmatmul.mubr.bf16.gmra.mrb[0].mxu0 %v646
    %v682 = vpop.f32.mrb[0].mxu0
    %v683 = vadd.f32 %v38, %v682
    %v684 = vpop.f32.mrb[0].mxu0
    %v685 = vpop.f32.mrb[0].mxu0
    %v686 = vpop.f32.mrb[0].mxu0
    %687 = vdwg.mxu0
    %v688 = vadd.f32 %v640, %v683
    %v689 = vxor.u32 %v688, 2147483648
    %v690 = vmul.f32 %v689, 1.442695
    %v691 = vpow.pop %v690
    %v692 = vadd.f32 %v691, 1.0
    %v693 = vrcp.pop %v692
    %v694 = vmul.f32 1.0, %v693
    %v697 = vunpack.c.l.s4 1966171168
    %v698 = vunpack.c.0.s8 %v697
    %v699 = vlaneseq
    %v700 = vshrl.u32 %v699, 7
    %v701 = vsub.s32 %v698, %v700
    %v702 = vrot.slane %v683, %v701
    %v704 = vunpack.c.l.s4 1966171168
    %v705 = vunpack.c.0.s8 %v704
    %v706 = vlaneseq
    %v707 = vshrl.u32 %v706, 7
    %v708 = vsub.s32 %v705, %v707
    %v709 = vrot.slane %v702, %v708
    %710 = vrot.lane.b32.xlu0 %v709, 64
    %v711 = vpop.permute.xlu0 %710
    %v713 = vmul.f32 %v694, %v711
    %715 = vrot.lane.b32.xlu0 %v713, 64
    %v716 = vpop.permute.xlu0 %715
    %v718 = vadd.f32 %v640, %v716
    %v719 = vtanh.pop %v718
    %v720 = vsub.f32 1.0, %v694
    %722 = vrot.lane.b32.xlu0 %v719, 96
    %v723 = vpop.permute.xlu0 %722
    %v725 = vmul.f32 %v720, %v723
    %v726 = vmul.f32 %v694, %v630
    %v727 = vadd.f32 %v725, %v726
    %s728 = sld [smem:[#allocation2 + $0x7]]
    %s729 = sshra.s32 %s728, 3
    %s730 = sand.u32 %s728, 7
    %s731 = sshra.s32 %s728, 3
    %s732 = sand.u32 %s728, 7
    %s733 = smul.u32 %s729, 2
    %s734 = smul.u32 %s733, 8
    %s735 = sadd.s32 %s734, %s732
    %s736 = scalar_lea.vmem %s1, %s735
    %v737 = vld [vmem:[%s736] ss:$8 sm:$0x3]
    %v738 = vpack.c.bf16 %v727, %v727
    %740 = vrot.lane.b32.xlu0 %v738, 96
    %v741 = vpop.permute.xlu0 %740
    %v743 = vsel %vm62, %v741, 0
    %745 = vmatprep.subr.bf16.mxu0 0
    %746 = vmatpush1.bf16.msra.mxu0 %v58
    %747 = vmatprep.subr.bf16.mxu0 0
    %748 = vmatpush1.bf16.msra.mxu0 %v59
    %749 = vmatprep.subr.bf16.mxu0 0
    %750 = vmatpush1.bf16.msra.mxu0 0
    %751 = vmatprep.subr.bf16.mxu0 0
    %752 = vmatpush1.bf16.msra.mxu0 0
    %753 = vmatprep.subr.bf16.mxu0 0
    %754 = vmatpush1.bf16.msra.mxu0 0
    %755 = vmatprep.subr.bf16.mxu0 0
    %756 = vmatpush1.bf16.msra.mxu0 0
    %757 = vmatprep.subr.bf16.mxu0 0
    %758 = vmatpush1.bf16.msra.mxu0 0
    %759 = vmatprep.subr.bf16.mxu0 0
    %760 = vmatpush1.bf16.msra.mxu0 0
    %761 = vmatprep.subr.bf16.mxu0 0
    %762 = vmatpush1.bf16.msra.mxu0 0
    %763 = vmatprep.subr.bf16.mxu0 0
    %764 = vmatpush1.bf16.msra.mxu0 0
    %765 = vmatprep.subr.bf16.mxu0 0
    %766 = vmatpush1.bf16.msra.mxu0 0
    %767 = vmatprep.subr.bf16.mxu0 0
    %768 = vmatpush1.bf16.msra.mxu0 0
    %769 = vmatprep.subr.bf16.mxu0 0
    %770 = vmatpush1.bf16.msra.mxu0 0
    %771 = vmatprep.subr.bf16.mxu0 0
    %772 = vmatpush1.bf16.msra.mxu0 0
    %773 = vmatprep.subr.bf16.mxu0 0
    %774 = vmatpush1.bf16.msra.mxu0 0
    %775 = vmatprep.subr.bf16.mxu0 0
    %776 = vmatpush1.bf16.msra.mxu0 0
    %777 = vmatprep.mubr.bf16.mxu0 0
    %778 = vmatmul.mubr.bf16.gmra.mrb[0].mxu0 %v743
    %v779 = vpop.f32.mrb[0].mxu0
    %v780 = vadd.f32 %v38, %v779
    %v781 = vpop.f32.mrb[0].mxu0
    %v782 = vpop.f32.mrb[0].mxu0
    %v783 = vpop.f32.mrb[0].mxu0
    %784 = vdwg.mxu0
    %v785 = vadd.f32 %v737, %v780
    %v786 = vxor.u32 %v785, 2147483648
    %v787 = vmul.f32 %v786, 1.442695
    %v788 = vpow.pop %v787
    %v789 = vadd.f32 %v788, 1.0
    %v790 = vrcp.pop %v789
    %v791 = vmul.f32 1.0, %v790
    %v794 = vunpack.c.l.s4 1966171168
    %v795 = vunpack.c.0.s8 %v794
    %v796 = vlaneseq
    %v797 = vshrl.u32 %v796, 7
    %v798 = vsub.s32 %v795, %v797
    %v799 = vrot.slane %v780, %v798
    %v801 = vunpack.c.l.s4 1966171168
    %v802 = vunpack.c.0.s8 %v801
    %v803 = vlaneseq
    %v804 = vshrl.u32 %v803, 7
    %v805 = vsub.s32 %v802, %v804
    %v806 = vrot.slane %v799, %v805
    %807 = vrot.lane.b32.xlu0 %v806, 64
    %v808 = vpop.permute.xlu0 %807
    %v810 = vmul.f32 %v791, %v808
    %812 = vrot.lane.b32.xlu0 %v810, 64
    %v813 = vpop.permute.xlu0 %812
    %v815 = vadd.f32 %v737, %v813
    %v816 = vtanh.pop %v815
    %v817 = vsub.f32 1.0, %v791
    %819 = vrot.lane.b32.xlu0 %v816, 96
    %v820 = vpop.permute.xlu0 %819
    %v822 = vmul.f32 %v817, %v820
    %v823 = vmul.f32 %v791, %v727
    %v824 = vadd.f32 %v822, %v823
    %v826 = vrot.slane %v737, 1
    %v828 = vxor.u32 %v826, 2147483648
    %v829 = vmul.f32 %v828, 1.442695
    %v830 = vpow.pop %v829
    %v831 = vadd.f32 %v830, 1.0
    %v832 = vrcp.pop %v831
    %v833 = vmul.f32 1.0, %v832
    %835 = vrot.lane.b32.xlu0 %v38, 32
    %v836 = vpop.permute.xlu0 %835
    %v838 = vmul.f32 %v833, %v836
    %839 = vrot.lane.b32.xlu0 %v737, 64
    %v840 = vpop.permute.xlu0 %839
    %v841 = vrot.slane %v840, 1
    %v843 = vadd.f32 %v841, %v838
    %v844 = vtanh.pop %v843
    %v845 = vsub.f32 1.0, %v833
    %847 = vrot.lane.b32.xlu0 %v844, 32
    %v848 = vpop.permute.xlu0 %847
    %v850 = vmul.f32 %v845, %v848
    %v851 = vadd.f32 %v824, %v850
    %v852 = vpack.c.bf16 %v851, %v851
    %v853 = vld [vmem:[%s4] sm:$0xf]
    %v854 = vld [vmem:[%s4 + $0x4] sm:$0xf]
    %v855 = vld [vmem:[%s4 + $0x8] sm:$0xf]
    %v856 = vld [vmem:[%s4 + $0xc] sm:$0xf]
    %858 = vrot.lane.b32.xlu0 %v852, 96
    %v859 = vpop.permute.xlu0 %858
    %v864 = vunpack.c.l.b16 %v853
    %v865 = vunpack.c.l.b16 %v854
    %v866 = vunpack.c.l.b16 %v855
    %v867 = vunpack.c.l.b16 %v856
    %v868 = vpack.c.b16 %v865, %v864
    %v869 = vpack.c.b16 %v867, %v866
    %v873 = vsel %vm62, %v859, 0
    %875 = vmatprep.subr.bf16.mxu0 0
    %876 = vmatpush1.bf16.msra.mxu0 %v868
    %877 = vmatprep.subr.bf16.mxu0 0
    %878 = vmatpush1.bf16.msra.mxu0 %v869
    %879 = vmatprep.subr.bf16.mxu0 0
    %880 = vmatpush1.bf16.msra.mxu0 0
    %881 = vmatprep.subr.bf16.mxu0 0
    %882 = vmatpush1.bf16.msra.mxu0 0
    %883 = vmatprep.subr.bf16.mxu0 0
    %884 = vmatpush1.bf16.msra.mxu0 0
    %885 = vmatprep.subr.bf16.mxu0 0
    %886 = vmatpush1.bf16.msra.mxu0 0
    %887 = vmatprep.subr.bf16.mxu0 0
    %888 = vmatpush1.bf16.msra.mxu0 0
    %889 = vmatprep.subr.bf16.mxu0 0
    %890 = vmatpush1.bf16.msra.mxu0 0
    %891 = vmatprep.subr.bf16.mxu0 0
    %892 = vmatpush1.bf16.msra.mxu0 0
    %893 = vmatprep.subr.bf16.mxu0 0
    %894 = vmatpush1.bf16.msra.mxu0 0
    %895 = vmatprep.subr.bf16.mxu0 0
    %896 = vmatpush1.bf16.msra.mxu0 0
    %897 = vmatprep.subr.bf16.mxu0 0
    %898 = vmatpush1.bf16.msra.mxu0 0
    %899 = vmatprep.subr.bf16.mxu0 0
    %900 = vmatpush1.bf16.msra.mxu0 0
    %901 = vmatprep.subr.bf16.mxu0 0
    %902 = vmatpush1.bf16.msra.mxu0 0
    %903 = vmatprep.subr.bf16.mxu0 0
    %904 = vmatpush1.bf16.msra.mxu0 0
    %905 = vmatprep.subr.bf16.mxu0 0
    %906 = vmatpush1.bf16.msra.mxu0 0
    %907 = vmatprep.mubr.bf16.mxu0 0
    %908 = vmatmul.mubr.bf16.gmra.mrb[0].mxu0 %v873
    %v909 = vpop.f32.mrb[0].mxu0
    %v910 = vadd.f32 %v39, %v909
    %v911 = vpop.f32.mrb[0].mxu0
    %v912 = vpop.f32.mrb[0].mxu0
    %v913 = vpop.f32.mrb[0].mxu0
    %914 = vdwg.mxu0
    %vm915 = vcmask 122944
    %v916 = vsel %vm915, %v910, -inf
    %917 = vmax.xlane.f32.xlu0 %v916
    %v918 = vpop.xlane.xlu0 %917
    %v919 = vsub.f32 %v910, %v918
    %v920 = vmul.f32 %v919, 1.442695
    %v921 = vpow.pop %v920
    %923 = vrot.lane.b32.xlu0 %v921, 120
    %v924 = vpop.permute.xlu0 %923
    %vm926 = vcmask 57344
    %v927 = vsel %vm926, %v924, 0.0
    %928 = vadd.xlane.f32.xlu0 %v927
    %v929 = vpop.xlane.xlu0 %928
    %v930 = vrcp.pop %v929
    %v931 = vmul.f32 %v921, %v930
    %v932 = vadd.f32 %v931, 1e-06
    %vm933 = vcmask 64512
    %v934 = vsel %vm933, %v910, %v932
    %vm935 = vcmask 122880
    %936 = vst.msk [vmem:[%s5] sm:$0x1] %vm935, %v934
    // Predicated region
    $region26: #{enc_txtrnn.1} parent=1 // pred_check
      _
    $region27: #{enc_txtrnn.1} parent=1 // pred_check_branch
      %938 = sbr.rel (0) target = $region29
    $region28: #{enc_txtrnn.1} parent=1 // pred_region
      _
    $region29: #{enc_txtrnn.1} parent=1 // pred_fallthru
      _
    // Predicated region
    $region30: #{enc_txtrnn.1} parent=1 // pred_check
      _
    $region31: #{enc_txtrnn.1} parent=1 // pred_check_branch
      %940 = sbr.rel (0) target = $region33
    $region32: #{enc_txtrnn.1} parent=1 // pred_region
      _
    $region33: #{enc_txtrnn.1} parent=1 // pred_fallthru
      _
    %941 = vsyncpa [#allocation3], 1

</llo_original>
